<compile_context>
chip_gen: v7x
topology: tpu7x:2x2x1
jax: 0.10.0
libtpu: 0.0.40
codegen_flags: <defaults>
</compile_context>

<pallas_src>
import jax
import jax.numpy as jnp
from jax.experimental import pallas as pl
from jax.experimental.pallas import tpu as pltpu

ALPHA = 0.25
GAMMA = 2.0          # implemented as an explicit square (VPU mul), not jnp.power
LANES = 128
ROW_ALIGN = 32       # row-count alignment: legal sublane packing for f32/bf16/int8/bool
ALIGN = ROW_ALIGN * LANES


def _cdiv(a, b):
    return -(-a // b)


def _round_up(a, b):
    return _cdiv(a, b) * b


def _chip_defaults():
    """Generation-aware defaults: (num_slices, row_tile, vmem_capacity_bytes)."""
    num_slices = 1            # v5e / v6e: single TensorCore -> parallel split buys nothing
    row_tile = 8192           # ~4 MiB of f32 logits per grid step
    vmem_cap = 64 << 20       # conservative fallback = v7x per-TC VMEM
    try:
        kind = jax.devices()[0].device_kind.lower()
    except Exception:
        kind = ""
    try:
        info = pltpu.get_tpu_info()
        vmem_cap = int(getattr(info, "vmem_capacity_bytes", vmem_cap))
    except Exception:
        pass
    vmem_cap = max(vmem_cap, 32 << 20)
    if "7" in kind:
        # v7x: 2 TensorCores/chip + 3.2 TB/s HBM -> deeper tiles + core split.
        num_slices = 2
        row_tile = 16384
    elif ("v4" in kind) or ("v5p" in kind):
        num_slices = 2        # megacore chips: shard the leading "parallel" axis
    return num_slices, row_tile, vmem_cap


def _focal_loss_kernel(x_ref, y_ref, out_ref):
    """Grid = (slices, blocks_per_slice). out_ref: resident (1, 8, 128) f32 partial sum."""
    i = pl.program_id(1)

    @pl.when(i == 0)
    def _():
        out_ref[...] = jnp.zeros_like(out_ref)

    x = x_ref[...].astype(jnp.float32)    # cast after the VMEM load; HBM traffic stays narrow
    lbl = y_ref[...]                      # any integer / bool dtype; labels assumed in {0, 1}
    is_one = lbl == 1

    # alpha weighting: alpha where label==1 else (1 - alpha)
    alpha_t = jnp.where(is_one, ALPHA, 1.0 - ALPHA)

    # Let u = -x if label==1 else x. Then (for binary labels):
    #   1 - pt = sigmoid(u)
    #   BCEWithLogits(x, y) = max(u, 0) + log1p(exp(-|u|))
    # and |u| == |x|, so a single exp(-|x|) feeds both terms.
    u = jnp.where(is_one, -x, x)
    e = jnp.exp(-jnp.abs(x))                               # one shared EUP exp
    inv = pl.reciprocal(1.0 + e, approx=False)             # exact: free in the HBM-bound regime
    one_minus_pt = jnp.where(u >= 0.0, 1.0, e) * inv       # numerically stable sigmoid(u)
    ce = jnp.maximum(u, 0.0) + jnp.log1p(e)                # BCE-with-logits

    # gamma = 2 -> explicit square on the VPU, not jnp.power (EUP exp+log)
    loss = alpha_t * (one_minus_pt * one_minus_pt) * ce    # (tile, 128) f32

    # vreg-shaped accumulation: fold the row tile onto 8 sublanes with VPU adds;
    # the expensive cross-lane/sublane reduction happens once, in the wrapper.
    t = loss.shape[0]
    out_ref[...] += loss.reshape(t // 8, 8, LANES).sum(axis=0)[None, :, :]


def _partial_sums(x2d, y2d, *, tile, slices, blocks_per_slice, vmem_cap):
    """Sum focal loss over the first slices*blocks_per_slice*tile rows of x2d/y2d.

    Rows beyond that range are simply never read (the index_map stays inside them),
    so no padding/copy of the big operands is needed.  Returns (slices, 8, 128) f32.
    """
    cp = {"dimension_semantics": ("parallel", "arbitrary")}
    dbl_buf = 2 * tile * LANES * (x2d.dtype.itemsize + y2d.dtype.itemsize)
    cp["vmem_limit_bytes"] = int(min(max(dbl_buf + (8 << 20), 16 << 20),
                                     (vmem_cap * 3) // 4))

    def in_map(s, i):
        return (s * blocks_per_slice + i, 0)

    return pl.pallas_call(
        _focal_loss_kernel,
        out_shape=jax.ShapeDtypeStruct((slices, 8, LANES), jnp.float32),
        grid_spec=pltpu.PrefetchScalarGridSpec(
            num_scalar_prefetch=0,
            grid=(slices, blocks_per_slice),
            in_specs=[
                pl.BlockSpec((tile, LANES), in_map),
                pl.BlockSpec((tile, LANES), in_map),
            ],
            out_specs=pl.BlockSpec((1, 8, LANES), lambda s, i: (s, 0, 0)),
        ),
        compiler_params=pltpu.CompilerParams(**cp),
    )(x2d, y2d)


def focal_loss_v1(logits, label, *, row_tile=None, num_slices=None):
    """Focal loss (alpha=0.25, gamma=2, reduction='mean').

    logits/label have the same shape; label must be binary {0, 1} (any int/bool
    dtype — int8/bool recommended to halve HBM traffic; no cast is done here).
    """
    assert logits.shape == label.shape
    total = int(logits.size)
    assert total > 0

    def_slices, def_tile, vmem_cap = _chip_defaults()
    if row_tile is None:
        row_tile = def_tile
    if num_slices is None:
        num_slices = def_slices

    x_flat = logits.reshape(-1)
    y_flat = label.reshape(-1)

    # Lane/sublane alignment only: the flat length must be a multiple of 32*128 to
    # view the stream as packed (rows, 128) slabs.  This is the only place a
    # whole-array copy can happen; realistic NCHW tensors are already aligned.
    # Sentinel (label=1, logit=+1e4) contributes exactly 0 loss, so the sum stays
    # exact and the mean divisor stays `total`.
    # TODO(synk): a manual-DMA (memory_space=pl.ANY) tail would avoid even this copy.
    if total % ALIGN:
        pad = ALIGN - total % ALIGN
        x_flat = jnp.pad(x_flat, (0, pad), constant_values=1e4)
        y_flat = jnp.pad(y_flat, (0, pad), constant_values=1)

    rows = x_flat.size // LANES          # multiple of 32
    x2d = x_flat.reshape(rows, LANES)
    y2d = y_flat.reshape(rows, LANES)

    # Clamp the tile so the double-buffered input working set stays well inside VMEM.
    per_row_bytes = 2 * LANES * (x2d.dtype.itemsize + y2d.dtype.itemsize)
    max_tile = max(ROW_ALIGN,
                   ((vmem_cap * 55 // 100) // per_row_bytes) // ROW_ALIGN * ROW_ALIGN)
    tile = min(_round_up(int(row_tile), ROW_ALIGN), max_tile, rows)

    nblocks = rows // tile                          # >= 1
    slices = max(1, min(int(num_slices), nblocks))  # >1 only if there is enough work
    blocks_per_slice = nblocks // slices
    bulk_rows = slices * blocks_per_slice * tile    # streamed copy-free
    tail_rows = rows - bulk_rows                    # < (slices+1)*tile, multiple of 32

    partial = _partial_sums(x2d, y2d, tile=tile, slices=slices,
                            blocks_per_slice=blocks_per_slice, vmem_cap=vmem_cap)
    loss_sum = jnp.sum(partial)

    if tail_rows:
        # Sub-tile remainder: slice out only the small tail (cheap copy, < a few
        # tiles), pad it to a small tile multiple with zero-loss sentinels and run
        # the same kernel once more.
        x_t = x2d[bulk_rows:]
        y_t = y2d[bulk_rows:]
        t_tile = min(tail_rows, 1024)
        t_blocks = _cdiv(tail_rows, t_tile)
        t_pad = t_blocks * t_tile - tail_rows
        if t_pad:
            x_t = jnp.pad(x_t, ((0, t_pad), (0, 0)), constant_values=1e4)
            y_t = jnp.pad(y_t, ((0, t_pad), (0, 0)), constant_values=1)
        partial_t = _partial_sums(x_t, y_t, tile=t_tile, slices=1,
                                  blocks_per_slice=t_blocks, vmem_cap=vmem_cap)
        loss_sum = loss_sum + jnp.sum(partial_t)

    # reduction='mean'
    # TODO(synk): reduction='sum'/'none' and non-default alpha/gamma of the module
    # are not exposed here.
    return loss_sum / total


def _focal_loss_ref(logits, label):
    x = logits.astype(jnp.float32)
    y = (label == 1).astype(jnp.float32)
    is_one = label == 1
    alpha_t = jnp.where(is_one, ALPHA, 1.0 - ALPHA)
    probs = jax.nn.sigmoid(x)
    pt = jnp.where(is_one, probs, 1.0 - probs)
    ce = jnp.maximum(x, 0.0) - x * y + jnp.log1p(jnp.exp(-jnp.abs(x)))
    return jnp.mean(alpha_t * jnp.square(1.0 - pt) * ce)


if __name__ == "__main__":
    key = jax.random.PRNGKey(0)
    k1, k2, k3, k4, k5, k6 = jax.random.split(key, 6)

    # 1) NCHW logits + int32 {0,1} labels (binary multi-label), default tiling.
    N, C, H, W = 2, 4, 16, 16
    logits = jax.random.normal(k1, (N, C, H, W), dtype=jnp.float32)
    label = jax.random.randint(k2, (N, C, H, W), 0, 2, dtype=jnp.int32)
    loss = focal_loss_v1(logits, label)
    jax.block_until_ready(loss)
    ref = _focal_loss_ref(logits, label)
    assert jnp.allclose(loss, ref, rtol=5e-5, atol=1e-7), (loss, ref)

    # 2) Ragged shape exercising the (rare) lane-alignment sentinel pad; int8 labels.
    logits2 = jax.random.normal(k3, (2, 3, 7, 5), dtype=jnp.float32)
    label2 = jax.random.randint(k4, (2, 3, 7, 5), 0, 2, dtype=jnp.int8)
    loss2 = focal_loss_v1(logits2, label2)
    jax.block_until_ready(loss2)
    ref2 = _focal_loss_ref(logits2, label2)
    assert jnp.allclose(loss2, ref2, rtol=5e-5, atol=1e-7), (loss2, ref2)

    # 3) Shape/params forcing the multi-slice bulk grid plus the copy-free tail call
    #    (tiny row_tile only so a small test shape exercises those code paths).
    logits3 = jax.random.normal(k5, (2, 4, 32, 48), dtype=jnp.float32)
    label3 = jax.random.randint(k6, (2, 4, 32, 48), 0, 2, dtype=jnp.int8)
    loss3 = focal_loss_v1(logits3, label3, row_tile=32, num_slices=2)
    jax.block_until_ready(loss3)
    ref3 = _focal_loss_ref(logits3, label3)
    assert jnp.allclose(loss3, ref3, rtol=5e-5, atol=1e-7), (loss3, ref3)

    print("KERNEL_OK")
</pallas_src>

<mosaic_0001>
module attributes {stable_mosaic.version = 11 : i64} {
  func.func @_focal_loss_kernel(%arg0: i32, %arg1: i32, %arg2: memref<32x128xf32, #tpu.memory_space<vmem>>, %arg3: memref<32x128xi32, #tpu.memory_space<vmem>>, %arg4: memref<1x8x128xf32, #tpu.memory_space<vmem>>) attributes {dimension_semantics = [#tpu.dimension_semantics<parallel>, #tpu.dimension_semantics<arbitrary>], iteration_bounds = array<i64: 1, 1>, scalar_prefetch = 0 : i64, scratch_operands = 0 : i64, tpu.core_type = #tpu.core_type<tc>, window_params = [{transform_indices = @transform_0, window_bounds = array<i64: 32, 128>}, {transform_indices = @transform_1, window_bounds = array<i64: 32, 128>}, {transform_indices = @transform_2, window_bounds = array<i64: 1, 8, 128>}]} {
    %c0_i32 = arith.constant 0 : i32
    %0 = arith.cmpi eq, %arg1, %c0_i32 : i32
    %1 = arith.extui %0 : i1 to i32
    %c0_i32_0 = arith.constant 0 : i32
    %2 = arith.cmpi ne, %1, %c0_i32_0 : i32
    scf.if %2 {
      %cst_18 = arith.constant 0.000000e+00 : f32
      %38 = vector.broadcast %cst_18 : f32 to vector<1x8x128xf32>
      %c0_19 = arith.constant 0 : index
      %c0_20 = arith.constant 0 : index
      %c0_21 = arith.constant 0 : index
      %39 = vector.load %arg4[%c0_19, %c0_20, %c0_21] : memref<1x8x128xf32, #tpu.memory_space<vmem>>, vector<1x8x128xf32>
      tpu.vector_store %arg4[%c0_19, %c0_20, %c0_21], %38 {strides = array<i32>} : memref<1x8x128xf32, #tpu.memory_space<vmem>>, vector<1x8x128xf32>,
    } else {
    }
    %c0 = arith.constant 0 : index
    %c0_1 = arith.constant 0 : index
    %3 = vector.load %arg2[%c0, %c0_1] : memref<32x128xf32, #tpu.memory_space<vmem>>, vector<32x128xf32>
    %c0_2 = arith.constant 0 : index
    %c0_3 = arith.constant 0 : index
    %4 = vector.load %arg3[%c0_2, %c0_3] : memref<32x128xi32, #tpu.memory_space<vmem>>, vector<32x128xi32>
    %c1_i32 = arith.constant 1 : i32
    %5 = vector.broadcast %c1_i32 : i32 to vector<32x128xi32>
    %6 = arith.cmpi eq, %4, %5 : vector<32x128xi32>
    %cst = arith.constant 2.500000e-01 : f32
    %cst_4 = arith.constant 7.500000e-01 : f32
    %7 = vector.broadcast %cst : f32 to vector<32x128xf32>
    %8 = vector.broadcast %cst_4 : f32 to vector<32x128xf32>
    %9 = arith.select %6, %7, %8 : vector<32x128xi1>, vector<32x128xf32>
    %cst_5 = arith.constant 0.000000e+00 : f32
    %10 = vector.broadcast %cst_5 : f32 to vector<32x128xf32>
    %11 = arith.subf %10, %3 : vector<32x128xf32>
    %12 = arith.select %6, %11, %3 : vector<32x128xi1>, vector<32x128xf32>
    %13 = math.absf %3 : vector<32x128xf32>
    %cst_6 = arith.constant 0.000000e+00 : f32
    %14 = vector.broadcast %cst_6 : f32 to vector<32x128xf32>
    %15 = arith.subf %14, %13 : vector<32x128xf32>
    %16 = math.exp %15 : vector<32x128xf32>
    %cst_7 = arith.constant 1.000000e+00 : f32
    %17 = vector.broadcast %cst_7 : f32 to vector<32x128xf32>
    %18 = arith.addf %17, %16 : vector<32x128xf32>
    %19 = tpu.reciprocal %18 : vector<32x128xf32> -> vector<32x128xf32>
    %cst_8 = arith.constant 0.000000e+00 : f32
    %20 = vector.broadcast %cst_8 : f32 to vector<32x128xf32>
    %21 = arith.cmpf oge, %12, %20 : vector<32x128xf32>
    %cst_9 = arith.constant 1.000000e+00 : f32
    %22 = vector.broadcast %cst_9 : f32 to vector<32x128xf32>
    %23 = arith.select %21, %22, %16 : vector<32x128xi1>, vector<32x128xf32>
    %24 = arith.mulf %23, %19 : vector<32x128xf32>
    %cst_10 = arith.constant 0.000000e+00 : f32
    %25 = vector.broadcast %cst_10 : f32 to vector<32x128xf32>
    %26 = arith.maximumf %12, %25 : vector<32x128xf32>
    %27 = math.log1p %16 : vector<32x128xf32>
    %28 = arith.addf %26, %27 : vector<32x128xf32>
    %29 = arith.mulf %24, %24 : vector<32x128xf32>
    %30 = arith.mulf %9, %29 : vector<32x128xf32>
    %31 = arith.mulf %30, %28 : vector<32x128xf32>
    %c0_11 = arith.constant 0 : index
    %c0_12 = arith.constant 0 : index
    %c0_13 = arith.constant 0 : index
    %32 = vector.load %arg4[%c0_11, %c0_12, %c0_13] : memref<1x8x128xf32, #tpu.memory_space<vmem>>, vector<1x8x128xf32>
    %33 = vector.shape_cast %31 : vector<32x128xf32> to vector<4x8x128xf32>
    %cst_14 = arith.constant dense<0.000000e+00> : vector<8x128xf32>
    %34 = vector.multi_reduction <add>, %33, %cst_14 [0] : vector<4x8x128xf32> to vector<8x128xf32>
    %35 = vector.shape_cast %34 : vector<8x128xf32> to vector<1x8x128xf32>
    %36 = arith.addf %32, %35 : vector<1x8x128xf32>
    %c0_15 = arith.constant 0 : index
    %c0_16 = arith.constant 0 : index
    %c0_17 = arith.constant 0 : index
    %37 = vector.load %arg4[%c0_15, %c0_16, %c0_17] : memref<1x8x128xf32, #tpu.memory_space<vmem>>, vector<1x8x128xf32>
    tpu.vector_store %arg4[%c0_15, %c0_16, %c0_17], %36 {strides = array<i32>} : memref<1x8x128xf32, #tpu.memory_space<vmem>>, vector<1x8x128xf32>,
    return
  }
  func.func @transform_0(%arg0: i32, %arg1: i32) -> (i32, i32) {
    %c1_i32 = arith.constant 1 : i32
    %0 = arith.muli %arg0, %c1_i32 : i32
    %1 = arith.addi %0, %arg1 : i32
    %c0_i32 = arith.constant 0 : i32
    %c0_i32_0 = arith.constant 0 : i32
    return %1, %c0_i32 : i32, i32
  }
  func.func @transform_1(%arg0: i32, %arg1: i32) -> (i32, i32) {
    %c1_i32 = arith.constant 1 : i32
    %0 = arith.muli %arg0, %c1_i32 : i32
    %1 = arith.addi %0, %arg1 : i32
    %c0_i32 = arith.constant 0 : i32
    %c0_i32_0 = arith.constant 0 : i32
    return %1, %c0_i32 : i32, i32
  }
  func.func @transform_2(%arg0: i32, %arg1: i32) -> (i32, i32, i32) {
    %c0_i32 = arith.constant 0 : i32
    %c0_i32_0 = arith.constant 0 : i32
    %c0_i32_1 = arith.constant 0 : i32
    return %arg0, %c0_i32, %c0_i32_0 : i32, i32, i32
  }
}

</mosaic_0001>

<llo_original>
// kernel: tpu_custom_call.1
$region0: #{tpu_custom_call.1}
  #allocation0 [shape = 'u32[]', space=smem, size = 0x4, offset = 0x4, fixed_abs, tag = 'smem constant byte address 0x4 - core index']
  #allocation1 [shape = 'u32[144,128]{1,0:T(1,128)}', space=vmem, size = 0x12000, scoped, tag = 'internal scratch']
  %s0 = inlined_call_operand.hbm [shape: f32[32,128], index: 0, kind: input, shape index: {}]
  %s1 = inlined_call_operand.hbm [shape: s32[32,128], index: 1, kind: input, shape index: {}]
  %s2 = inlined_call_operand.hbm [shape: f32[1,8,128], index: 2, kind: output, shape index: {}]
  %s3 = sld [smem:[#allocation0]]
  $region30: #{tpu_custom_call.1} parent=0
    _
  %s5 = ssub.s32 1, %s3
  %s6 = scalar_select 0, %s5, %s3
  $region1: #{tpu_custom_call.1} parent=0
    #allocation2 [shape = 'u8[16384]{0}', space=vmem, size = 0x4000, scoped, tag = 'input window, operand 0, single buffered']
    #allocation3 [shape = 's32[1]{0}', space=sflag, size = 0x4, scoped, tag = 'scoped memory for tpu_custom_call.1']
    #allocation4 [shape = 's32[1]{0}', space=sflag, size = 0x4, scoped, tag = 'scoped memory for tpu_custom_call.1']
    #allocation5 [shape = 'u8[16384]{0}', space=vmem, size = 0x4000, scoped, tag = 'input window, operand 1, single buffered']
    #allocation6 [shape = 's32[1]{0}', space=sflag, size = 0x4, scoped, tag = 'scoped memory for tpu_custom_call.1']
    #allocation7 [shape = 'u8[4096]{0}', space=vmem, size = 0x1000, scoped, tag = 'output window, operand 0, single buffered']
    %7 = vsyncpa [#allocation3], 0
    %8 = vsyncpa [#allocation6], 0
    %9 = vsyncpa [#allocation4], 0
    // Predicated region
    $region2: #{tpu_custom_call.1} parent=1 // pred_check
      _
    $region3: #{tpu_custom_call.1} parent=1 // pred_check_branch
      %11 = sbr.rel (0) target = $region5
    $region4: #{tpu_custom_call.1} parent=1 // pred_region
      %s12 = sadd.s32 0, 0
      %s13 = smul.u32 4, %s12
      %s15 = ssub.s32 512, 512
      %16 = vsyncadd [#allocation3], %s15
      %s17 = smul.addr %s13, 128
      %s18 = scalar_lea.hbm %s0, %s17
      %s19 = sshll.u32 [#allocation2], 4
      %s20 = int_to_ptr.vmem [resolvable:$true] %s19
      %25 = dma.hbm_to_vmem [thread:$0]  %s18, 512, %s20, [#allocation3], 128, 128, 8
    $region5: #{tpu_custom_call.1} parent=1 // pred_fallthru
      _
    // Predicated region
    $region6: #{tpu_custom_call.1} parent=1 // pred_check
      _
    $region7: #{tpu_custom_call.1} parent=1 // pred_check_branch
      %27 = sbr.rel (0) target = $region9
    $region8: #{tpu_custom_call.1} parent=1 // pred_region
      %s28 = sadd.s32 0, 0
      %s29 = smul.u32 4, %s28
      %s31 = ssub.s32 512, 512
      %32 = vsyncadd [#allocation6], %s31
      %s33 = smul.addr %s29, 128
      %s34 = scalar_lea.hbm %s1, %s33
      %s35 = sshll.u32 [#allocation5], 4
      %s36 = int_to_ptr.vmem [resolvable:$true] %s35
      %41 = dma.hbm_to_vmem [thread:$0]  %s34, 512, %s36, [#allocation6], 128, 128, 8
    $region9: #{tpu_custom_call.1} parent=1 // pred_fallthru
      _
    // Predicated region
    $region10: #{tpu_custom_call.1} parent=1 // pred_check
      _
    $region11: #{tpu_custom_call.1} parent=1 // pred_check_branch
      %43 = sbr.rel (0) target = $region13
    $region12: #{tpu_custom_call.1} parent=1 // pred_region
      %44 = dma.done [#allocation3], 512
    $region13: #{tpu_custom_call.1} parent=1 // pred_fallthru
      _
    // Predicated region
    $region14: #{tpu_custom_call.1} parent=1 // pred_check
      _
    $region15: #{tpu_custom_call.1} parent=1 // pred_check_branch
      %46 = sbr.rel (0) target = $region17
    $region16: #{tpu_custom_call.1} parent=1 // pred_region
      %47 = dma.done [#allocation6], 512
    $region17: #{tpu_custom_call.1} parent=1 // pred_fallthru
      _
    %s48 = sadd.s32 0, 0
    %s49 = smul.u32 4, %s48
    %s50 = sadd.s32 0, 0
    %s51 = smul.u32 4, %s50
    %p52 = scmp.eq.s32.totalorder 0, 0
    // Predicated region
    $region18: #{tpu_custom_call.1} parent=1 // pred_check
      %p53 = pneg %p52
    $region19: #{tpu_custom_call.1} parent=1 // pred_check_branch
      %55 = sbr.rel (%p53) target = $region21
    $region20: #{tpu_custom_call.1} parent=1 // pred_region
      %56 = vst [vmem:[#allocation7] sm:$0xff] 0.0
    $region21: #{tpu_custom_call.1} parent=1 // pred_fallthru
      _
    %v57 = vld [vmem:[#allocation2] sm:$0xff]
    %v58 = vld [vmem:[#allocation2 + $0x8] sm:$0xff]
    %v59 = vld [vmem:[#allocation2 + $0x10] sm:$0xff]
    %v60 = vld [vmem:[#allocation2 + $0x18] sm:$0xff]
    %v61 = vld [vmem:[#allocation5] sm:$0xff]
    %v62 = vld [vmem:[#allocation5 + $0x8] sm:$0xff]
    %v63 = vld [vmem:[#allocation5 + $0x10] sm:$0xff]
    %v64 = vld [vmem:[#allocation5 + $0x18] sm:$0xff]
    %vm65 = vcmp.eq.s32.totalorder %v61, 1
    %vm66 = vcmp.eq.s32.totalorder %v62, 1
    %vm67 = vcmp.eq.s32.totalorder %v63, 1
    %vm68 = vcmp.eq.s32.totalorder %v64, 1
    %v69 = vsel %vm65, 0.25, 0.75
    %v70 = vsel %vm66, 0.25, 0.75
    %v71 = vsel %vm67, 0.25, 0.75
    %v72 = vsel %vm68, 0.25, 0.75
    %v73 = vsub.f32 0.0, %v57
    %v74 = vsub.f32 0.0, %v58
    %v75 = vsub.f32 0.0, %v59
    %v76 = vsub.f32 0.0, %v60
    %v77 = vsel %vm65, %v73, %v57
    %v78 = vsel %vm66, %v74, %v58
    %v79 = vsel %vm67, %v75, %v59
    %v80 = vsel %vm68, %v76, %v60
    %v81 = vand.u32 2147483647, %v57
    %v82 = vand.u32 2147483647, %v58
    %v83 = vand.u32 2147483647, %v59
    %v84 = vand.u32 2147483647, %v60
    %v85 = vsub.f32 0.0, %v81
    %v86 = vsub.f32 0.0, %v82
    %v87 = vsub.f32 0.0, %v83
    %v88 = vsub.f32 0.0, %v84
    %v89 = vmul.f32 %v85, 1.442695
    %v90 = vpow.pop %v89
    %v91 = vmul.f32 %v86, 1.442695
    %v92 = vpow.pop %v91
    %v93 = vmul.f32 %v87, 1.442695
    %v94 = vpow.pop %v93
    %v95 = vmul.f32 %v88, 1.442695
    %v96 = vpow.pop %v95
    %v97 = vadd.f32 %v90, 1.0
    %v98 = vadd.f32 %v92, 1.0
    %v99 = vadd.f32 %v94, 1.0
    %v100 = vadd.f32 %v96, 1.0
    %v101 = vrcp.pop %v97
    %v102 = vrcp.pop %v98
    %v103 = vrcp.pop %v99
    %v104 = vrcp.pop %v100
    %vm105 = vcmp.ge.f32.partialorder %v77, 0.0
    %vm106 = vcmp.ge.f32.partialorder %v78, 0.0
    %vm107 = vcmp.ge.f32.partialorder %v79, 0.0
    %vm108 = vcmp.ge.f32.partialorder %v80, 0.0
    %v109 = vsel %vm105, 1.0, %v90
    %v110 = vsel %vm106, 1.0, %v92
    %v111 = vsel %vm107, 1.0, %v94
    %v112 = vsel %vm108, 1.0, %v96
    %v113 = vmul.f32 %v109, %v101
    %v114 = vmul.f32 %v110, %v102
    %v115 = vmul.f32 %v111, %v103
    %v116 = vmul.f32 %v112, %v104
    %v117 = vmax.f32 %v77, 0.0
    %v118 = vmax.f32 %v78, 0.0
    %v119 = vmax.f32 %v79, 0.0
    %v120 = vmax.f32 %v80, 0.0
    %v121 = vadd.f32 %v90, 1.0
    %v122 = vlog2.pop %v121
    %v123 = vmul.f32 %v122, 0.6931472
    %v124 = vmul.f32 -0.5, %v90
    %v125 = vadd.f32 %v124, 1.0
    %v126 = vmul.f32 %v125, %v90
    %v127 = vand.u32 2147483647, %v90
    %vm128 = vcmp.lt.f32.partialorder %v127, 0.0004427343
    %v129 = vsel %vm128, %v126, %v123
    %v130 = vadd.f32 %v92, 1.0
    %v131 = vlog2.pop %v130
    %v132 = vmul.f32 %v131, 0.6931472
    %v133 = vmul.f32 -0.5, %v92
    %v134 = vadd.f32 %v133, 1.0
    %v135 = vmul.f32 %v134, %v92
    %v136 = vand.u32 2147483647, %v92
    %vm137 = vcmp.lt.f32.partialorder %v136, 0.0004427343
    %v138 = vsel %vm137, %v135, %v132
    %v139 = vadd.f32 %v94, 1.0
    %v140 = vlog2.pop %v139
    %v141 = vmul.f32 %v140, 0.6931472
    %v142 = vmul.f32 -0.5, %v94
    %v143 = vadd.f32 %v142, 1.0
    %v144 = vmul.f32 %v143, %v94
    %v145 = vand.u32 2147483647, %v94
    %vm146 = vcmp.lt.f32.partialorder %v145, 0.0004427343
    %v147 = vsel %vm146, %v144, %v141
    %v148 = vadd.f32 %v96, 1.0
    %v149 = vlog2.pop %v148
    %v150 = vmul.f32 %v149, 0.6931472
    %v151 = vmul.f32 -0.5, %v96
    %v152 = vadd.f32 %v151, 1.0
    %v153 = vmul.f32 %v152, %v96
    %v154 = vand.u32 2147483647, %v96
    %vm155 = vcmp.lt.f32.partialorder %v154, 0.0004427343
    %v156 = vsel %vm155, %v153, %v150
    %v157 = vadd.f32 %v117, %v129
    %v158 = vadd.f32 %v118, %v138
    %v159 = vadd.f32 %v119, %v147
    %v160 = vadd.f32 %v120, %v156
    %v161 = vmul.f32 %v113, %v113
    %v162 = vmul.f32 %v114, %v114
    %v163 = vmul.f32 %v115, %v115
    %v164 = vmul.f32 %v116, %v116
    %v165 = vmul.f32 %v69, %v161
    %v166 = vmul.f32 %v70, %v162
    %v167 = vmul.f32 %v71, %v163
    %v168 = vmul.f32 %v72, %v164
    %v169 = vmul.f32 %v165, %v157
    %v170 = vmul.f32 %v166, %v158
    %v171 = vmul.f32 %v167, %v159
    %v172 = vmul.f32 %v168, %v160
    %v173 = vld [vmem:[#allocation7] sm:$0xff]
    %v174 = vadd.f32 %v169, %v170
    %v175 = vadd.f32 %v174, %v171
    %v176 = vadd.f32 %v175, %v172
    %v177 = vadd.f32 %v173, %v176
    %178 = vst [vmem:[#allocation7] sm:$0xff] %v177
    // Predicated region
    $region22: #{tpu_custom_call.1} parent=1 // pred_check
      _
    $region23: #{tpu_custom_call.1} parent=1 // pred_check_branch
      %180 = sbr.rel (0) target = $region25
    $region24: #{tpu_custom_call.1} parent=1 // pred_region
      %s182 = ssub.s32 128, 128
      %183 = vsyncadd [#allocation4], %s182
      %s185 = sshll.u32 [#allocation7], 4
      %s186 = int_to_ptr.vmem [resolvable:$true] %s185
      %188 = dma.vmem_to_hbm [thread:$0]  %s186, 128, %s2, [#allocation4]
    $region25: #{tpu_custom_call.1} parent=1 // pred_fallthru
      _
    // Predicated region
    $region26: #{tpu_custom_call.1} parent=1 // pred_check
      _
    $region27: #{tpu_custom_call.1} parent=1 // pred_check_branch
      %190 = sbr.rel (0) target = $region29
    $region28: #{tpu_custom_call.1} parent=1 // pred_region
      %191 = dma.done [#allocation4], 128
    $region29: #{tpu_custom_call.1} parent=1 // pred_fallthru
      _
    %192 = vsyncpa [#allocation3], 1
    %193 = vsyncpa [#allocation6], 1
    %194 = vsyncpa [#allocation4], 1

</llo_original>
